<compile_context>
chip_gen: v7x
topology: tpu7x:2x2x1
jax: 0.10.0
libtpu: 0.0.40
codegen_flags: <defaults>
</compile_context>

<pallas_src>
import jax
import jax.numpy as jnp
from jax.experimental import pallas as pl
from jax.experimental.pallas import tpu as pltpu


def _round_up(x, m):
    return (x + m - 1) // m * m


def _gru_body(feat_ref, keep_ref, h0_ref, wih_ref, whh_ref, bgi_ref, bghn_ref,
              out_ref, h_ref, gi_ref):
    """One time-chunk of the GRU recurrence.

    feat_ref : (Tc*B, D)    bf16/f32  time-major chunk; rows t*B..t*B+B-1 = step t
    keep_ref : (Tc*B, 128)  f32       (1 - begin_mask) slab, or None (no mask)
    h0_ref   : (B, Hp)      f32       initial hidden state (padded lanes zero)
    wih_ref  : (D, 3*Hp)    bf16/f32  W_ih^T, per-gate 128-lane slabs (r, z, n)
    whh_ref  : (Hp, 3*Hp)   bf16/f32  W_hh^T, per-gate 128-lane slabs
    bgi_ref  : (1, 3*Hp)    f32       b_ih (+ b_hh for r,z) per-gate slabs
    bghn_ref : (1, Hp)      f32       b_hh of the n gate only
    out_ref  : (Tc*B, Hp)   f32       hidden state per step (padded lanes zero)
    h_ref    : (B, Hp)      f32       VMEM hidden carry, persists across chunks
    gi_ref   : (Tc*B, 3*Hp) f32       VMEM scratch: hoisted input projection
    """
    B, Hp = h0_ref.shape
    Tc = feat_ref.shape[0] // B
    mm_dtype = wih_ref.dtype

    @pl.when(pl.program_id(0) == 0)
    def _():
        h_ref[...] = h0_ref[...]

    # Non-recurrent input projection for the whole chunk: ONE MXU matmul
    # (biases for r/z and b_ih for n are pre-folded into bgi).
    gi_ref[...] = (jnp.dot(feat_ref[...], wih_ref[...],
                           preferred_element_type=jnp.float32) + bgi_ref[...])

    # Hoist the n-gate hidden-bias broadcast out of the serial loop
    # (JAX does not CSE broadcast_in_dim).
    bghn_b = jnp.broadcast_to(bghn_ref[...], (B, Hp))
    # Keep W_hh in vregs only while it fits comfortably (Hp==128 -> ~24 bf16
    # vregs); for larger H re-read it from VMEM inside the loop (cheap vld,
    # avoids spilling the whole register file across the unrolled loop).
    whh_hoisted = whh_ref[...] if Hp <= 128 else None

    def step(t, h):
        row = pl.multiple_of(t * B, B)
        if keep_ref is None:
            hx = h
        else:
            keep = keep_ref[pl.ds(row, B), :]
            if keep.shape[1] == Hp:
                hx = h * keep
            else:  # Hp > 128: lane-broadcast the per-row mask (VPU/XLU, off MXU path)
                hx = h * jnp.broadcast_to(keep[:, :1], h.shape)
        gi = gi_ref[pl.ds(row, B), :]
        rhs = whh_hoisted if whh_hoisted is not None else whh_ref[...]
        gh = jnp.dot(hx.astype(mm_dtype), rhs, preferred_element_type=jnp.float32)
        # 128-lane-aligned gate slabs: no intra-vreg slicing.
        r = jax.nn.sigmoid(gi[:, 0:Hp] + gh[:, 0:Hp])
        z = jax.nn.sigmoid(gi[:, Hp:2 * Hp] + gh[:, Hp:2 * Hp])
        n = jnp.tanh(gi[:, 2 * Hp:] + r * (gh[:, 2 * Hp:] + bghn_b))
        h_new = n + z * (hx - n)              # == (1-z)*n + z*hx, one fewer op
        out_ref[pl.ds(row, B), :] = h_new
        return h_new

    h_ref[...] = jax.lax.fori_loop(0, Tc, step, h_ref[...],
                                   unroll=min(Tc, 8))


def _gru_kernel_masked(feat_ref, keep_ref, h0_ref, wih_ref, whh_ref, bgi_ref,
                       bghn_ref, out_ref, h_ref, gi_ref):
    _gru_body(feat_ref, keep_ref, h0_ref, wih_ref, whh_ref, bgi_ref, bghn_ref,
              out_ref, h_ref, gi_ref)


def _gru_kernel_nomask(feat_ref, h0_ref, wih_ref, whh_ref, bgi_ref, bghn_ref,
                       out_ref, h_ref, gi_ref):
    _gru_body(feat_ref, None, h0_ref, wih_ref, whh_ref, bgi_ref, bghn_ref,
              out_ref, h_ref, gi_ref)


def _pick_time_chunk(T, B, D, Hp, feat_bytes, time_chunk):
    """Largest divisor of T whose chunk slabs fit a ~8 MiB VMEM budget."""
    if time_chunk is None:
        per_step = B * (D * feat_bytes + 128 * 4 + Hp * 4) * 2 + B * 3 * Hp * 4
        time_chunk = max(1, (8 << 20) // max(per_step, 1))
    tc = max(1, min(int(time_chunk), T))
    while T % tc != 0:
        tc -= 1
    if (tc * B) % 8 != 0 and tc != T:   # keep sublane-aligned chunk blocks
        tc = T
    return tc


def gru_rnn_forward(feat, params, rnncs=None, begin_mask=None,
                    matmul_dtype=jnp.bfloat16, time_chunk=None):
    """Pallas equivalent of GRU_RNN.forward.

    feat:       [T, B, in_dim] float32
    params:     dict with 'weight_ih' [3H, in_dim], 'weight_hh' [3H, H],
                'bias_ih' [3H], 'bias_hh' [3H]  (gate order r, z, n)
    rnncs:      optional {'hx': [1, B, H]} (or [B, H]); None -> zeros
    begin_mask: optional [T, B, 1] (or [T, B]); None -> no reset
    returns:    (output [T, B, H], {'hx': [T, B, H]})
    """
    feat = jnp.asarray(feat, jnp.float32)
    T, B, D = feat.shape
    H = params["weight_hh"].shape[1]
    Hp = _round_up(H, 128)            # one 128-lane slab per gate
    G = 3 * Hp

    wih = jnp.asarray(params["weight_ih"], jnp.float32)   # [3H, D]
    whh = jnp.asarray(params["weight_hh"], jnp.float32)   # [3H, H]
    bih = jnp.asarray(params["bias_ih"], jnp.float32)     # [3H]
    bhh = jnp.asarray(params["bias_hh"], jnp.float32)     # [3H]

    # --- per-gate 128-lane aligned weight / bias slabs (gate order r, z, n) ---
    wih_p = jnp.zeros((D, G), jnp.float32)
    whh_p = jnp.zeros((Hp, G), jnp.float32)
    bgi = jnp.zeros((1, G), jnp.float32)     # folded into input projection
    bghn = jnp.zeros((1, Hp), jnp.float32)   # n-gate hidden bias only
    for g in range(3):
        sl = slice(g * Hp, g * Hp + H)
        wih_p = wih_p.at[:, sl].set(wih[g * H:(g + 1) * H, :].T)
        whh_p = whh_p.at[:H, sl].set(whh[g * H:(g + 1) * H, :].T)
        if g < 2:   # r, z: b_ih + b_hh both sit outside the r* term
            bgi = bgi.at[0, sl].set(bih[g * H:(g + 1) * H] + bhh[g * H:(g + 1) * H])
        else:       # n: b_hh must stay inside r * (hx @ W_hn^T + b_hn)
            bgi = bgi.at[0, sl].set(bih[g * H:(g + 1) * H])
            bghn = bghn.at[0, :H].set(bhh[g * H:(g + 1) * H])

    if rnncs:
        hx0 = jnp.asarray(rnncs["hx"], jnp.float32)
        if hx0.ndim == 3:
            hx0 = hx0[0]
    else:
        hx0 = jnp.zeros((B, H), jnp.float32)
    hx0_p = jnp.zeros((B, Hp), jnp.float32).at[:, :H].set(hx0)

    feat2 = feat.reshape(T * B, D).astype(matmul_dtype)

    feat_bytes = jnp.dtype(matmul_dtype).itemsize
    tc = _pick_time_chunk(T, B, D, Hp, feat_bytes, time_chunk)
    n_chunks = T // tc
    cb = tc * B                       # rows per time chunk

    KL = 128                          # slim mask: a single 128-lane slab
    has_mask = begin_mask is not None

    in_specs = [pl.BlockSpec((cb, D), lambda c: (c, 0))]          # feat chunk
    args = [feat2]
    if has_mask:
        bm = jnp.asarray(begin_mask, jnp.float32)
        if bm.ndim == 2:
            bm = bm[:, :, None]
        keep = jnp.broadcast_to(1.0 - bm, (T, B, KL)).reshape(T * B, KL)
        in_specs.append(pl.BlockSpec((cb, KL), lambda c: (c, 0)))  # keep chunk
        args.append(keep)
    in_specs += [
        pl.BlockSpec((B, Hp), lambda c: (0, 0)),      # h0 (padded)
        pl.BlockSpec((D, G), lambda c: (0, 0)),       # W_ih^T (padded slabs)
        pl.BlockSpec((Hp, G), lambda c: (0, 0)),      # W_hh^T (padded slabs)
        pl.BlockSpec((1, G), lambda c: (0, 0)),       # b_gi
        pl.BlockSpec((1, Hp), lambda c: (0, 0)),      # b_gh (n gate only)
    ]
    args += [hx0_p, wih_p.astype(matmul_dtype), whh_p.astype(matmul_dtype),
             bgi, bghn]

    kernel = _gru_kernel_masked if has_mask else _gru_kernel_nomask

    out2 = pl.pallas_call(
        kernel,
        out_shape=jax.ShapeDtypeStruct((T * B, Hp), jnp.float32),
        grid_spec=pltpu.PrefetchScalarGridSpec(
            num_scalar_prefetch=0,
            grid=(n_chunks,),                       # sequential time chunks
            in_specs=in_specs,
            out_specs=pl.BlockSpec((cb, Hp), lambda c: (c, 0)),
            scratch_shapes=[
                pltpu.VMEM((B, Hp), jnp.float32),   # hidden carry (persists)
                pltpu.VMEM((cb, G), jnp.float32),   # hoisted input projection
            ]),
        compiler_params=pltpu.CompilerParams(
            dimension_semantics=("arbitrary",),      # carried dependency
            vmem_limit_bytes=48 * 1024 * 1024),
    )(*args)

    out = out2[:, :H].reshape(T, B, H)
    return out, {"hx": out}


def _gru_reference(feat, params, hx0, begin_mask):
    """Pure-JAX reference mirroring torch.nn.GRUCell semantics."""
    wih, whh = params["weight_ih"], params["weight_hh"]
    bih, bhh = params["bias_ih"], params["bias_hh"]
    H = whh.shape[1]

    def step(hx, inputs):
        x, m = inputs
        hx = hx * (1.0 - m)
        gi = x @ wih.T + bih
        gh = hx @ whh.T + bhh
        i_r, i_z, i_n = gi[:, :H], gi[:, H:2 * H], gi[:, 2 * H:]
        h_r, h_z, h_n = gh[:, :H], gh[:, H:2 * H], gh[:, 2 * H:]
        r = jax.nn.sigmoid(i_r + h_r)
        z = jax.nn.sigmoid(i_z + h_z)
        n = jnp.tanh(i_n + r * h_n)
        h_new = (1.0 - z) * n + z * hx
        return h_new, h_new

    _, outs = jax.lax.scan(step, hx0, (feat, begin_mask))
    return outs


if __name__ == "__main__":
    # Small shapes implied by the forward: feat [T, B, in_dim]
    T, B, in_dim, H = 8, 8, 32, 32

    key = jax.random.PRNGKey(0)
    k_feat, k_mask, k_hx, k_wih, k_whh, k_bih, k_bhh = jax.random.split(key, 7)

    feat = jax.random.normal(k_feat, (T, B, in_dim), jnp.float32)
    begin_mask = (jax.random.uniform(k_mask, (T, B, 1)) < 0.2).astype(jnp.float32)
    hx0 = jax.random.normal(k_hx, (B, H), jnp.float32) * 0.5

    bound = float(1.0 / (H ** 0.5))
    params = {
        "weight_ih": jax.random.uniform(k_wih, (3 * H, in_dim), jnp.float32,
                                        -bound, bound),
        "weight_hh": jax.random.uniform(k_whh, (3 * H, H), jnp.float32,
                                        -bound, bound),
        "bias_ih": jax.random.uniform(k_bih, (3 * H,), jnp.float32, -bound, bound),
        "bias_hh": jax.random.uniform(k_bhh, (3 * H,), jnp.float32, -bound, bound),
    }

    ref = _gru_reference(feat, params, hx0, begin_mask)

    # Exactness check: f32 MXU operands, small time chunk to exercise the
    # cross-chunk hidden-state carry (grid = 4).
    out_f32, _ = gru_rnn_forward(feat, params, rnncs={"hx": hx0[None]},
                                 begin_mask=begin_mask,
                                 matmul_dtype=jnp.float32, time_chunk=2)
    out_f32 = jax.block_until_ready(out_f32)
    assert out_f32.shape == (T, B, H)
    assert jnp.allclose(out_f32, ref, atol=1e-5, rtol=1e-5), "f32 mismatch vs reference"

    # Performance configuration: bf16 MXU operands, default (budget-based) chunking.
    output, rnncs_s = gru_rnn_forward(feat, params, rnncs={"hx": hx0[None]},
                                      begin_mask=begin_mask,
                                      matmul_dtype=jnp.bfloat16)
    output = jax.block_until_ready(output)
    assert output.shape == (T, B, H)
    assert rnncs_s["hx"].shape == (T, B, H)
    assert jnp.allclose(output, ref, atol=3e-2, rtol=3e-2), "bf16 mismatch vs reference"

    # No-mask / no-initial-state specialization (skips the keep load entirely).
    ref_nm = _gru_reference(feat, params, jnp.zeros((B, H), jnp.float32),
                            jnp.zeros((T, B, 1), jnp.float32))
    out_nm, _ = gru_rnn_forward(feat, params, rnncs=None, begin_mask=None,
                                matmul_dtype=jnp.float32)
    out_nm = jax.block_until_ready(out_nm)
    assert jnp.allclose(out_nm, ref_nm, atol=1e-5, rtol=1e-5), "no-mask mismatch"

    print("KERNEL_OK")
</pallas_src>

<mosaic_0001>
module attributes {stable_mosaic.version = 11 : i64} {
  func.func @_gru_kernel_masked(%arg0: i32, %arg1: memref<16x32xf32, #tpu.memory_space<vmem>>, %arg2: memref<16x128xf32, #tpu.memory_space<vmem>>, %arg3: memref<8x128xf32, #tpu.memory_space<vmem>>, %arg4: memref<32x384xf32, #tpu.memory_space<vmem>>, %arg5: memref<128x384xf32, #tpu.memory_space<vmem>>, %arg6: memref<1x384xf32, #tpu.memory_space<vmem>>, %arg7: memref<1x128xf32, #tpu.memory_space<vmem>>, %arg8: memref<16x128xf32, #tpu.memory_space<vmem>>, %arg9: memref<8x128xf32, #tpu.memory_space<vmem>>, %arg10: memref<16x384xf32, #tpu.memory_space<vmem>>) attributes {dimension_semantics = [#tpu.dimension_semantics<arbitrary>], iteration_bounds = array<i64: 4>, scalar_prefetch = 0 : i64, scratch_operands = 2 : i64, tpu.core_type = #tpu.core_type<tc>, window_params = [{transform_indices = @transform_0, window_bounds = array<i64: 16, 32>}, {transform_indices = @transform_1, window_bounds = array<i64: 16, 128>}, {pipeline_mode = #tpu.pipeline_mode<synchronous>, transform_indices = @transform_2, window_bounds = array<i64: 8, 128>}, {pipeline_mode = #tpu.pipeline_mode<synchronous>, transform_indices = @transform_3, window_bounds = array<i64: 32, 384>}, {pipeline_mode = #tpu.pipeline_mode<synchronous>, transform_indices = @transform_4, window_bounds = array<i64: 128, 384>}, {pipeline_mode = #tpu.pipeline_mode<synchronous>, transform_indices = @transform_5, window_bounds = array<i64: 1, 384>}, {pipeline_mode = #tpu.pipeline_mode<synchronous>, transform_indices = @transform_6, window_bounds = array<i64: 1, 128>}, {transform_indices = @transform_7, window_bounds = array<i64: 16, 128>}]} {
    %c0_i32 = arith.constant 0 : i32
    %0 = arith.cmpi eq, %arg0, %c0_i32 : i32
    %1 = arith.extui %0 : i1 to i32
    %c0_i32_0 = arith.constant 0 : i32
    %2 = arith.cmpi ne, %1, %c0_i32_0 : i32
    scf.if %2 {
      %c0_30 = arith.constant 0 : index
      %c0_31 = arith.constant 0 : index
      %86 = vector.load %arg3[%c0_30, %c0_31] : memref<8x128xf32, #tpu.memory_space<vmem>>, vector<8x128xf32>
      %c0_32 = arith.constant 0 : index
      %c0_33 = arith.constant 0 : index
      %87 = vector.load %arg9[%c0_32, %c0_33] : memref<8x128xf32, #tpu.memory_space<vmem>>, vector<8x128xf32>
      tpu.vector_store %arg9[%c0_32, %c0_33], %86 {strides = array<i32>} : memref<8x128xf32, #tpu.memory_space<vmem>>, vector<8x128xf32>,
    } else {
    }
    %c0 = arith.constant 0 : index
    %c0_1 = arith.constant 0 : index
    %3 = vector.load %arg1[%c0, %c0_1] : memref<16x32xf32, #tpu.memory_space<vmem>>, vector<16x32xf32>
    %c0_2 = arith.constant 0 : index
    %c0_3 = arith.constant 0 : index
    %4 = vector.load %arg4[%c0_2, %c0_3] : memref<32x384xf32, #tpu.memory_space<vmem>>, vector<32x384xf32>
    %cst = arith.constant dense<0.000000e+00> : vector<16x384xf32>
    %5 = tpu.matmul %3, %4, %cst {dimension_numbers = #tpu.dot_dimension_numbers<[1], [0], [0], [1], [0, 0, 1, 1], [], []>} : vector<16x32xf32>, vector<32x384xf32>, vector<16x384xf32> -> vector<16x384xf32>
    %c0_4 = arith.constant 0 : index
    %c0_5 = arith.constant 0 : index
    %6 = vector.load %arg6[%c0_4, %c0_5] : memref<1x384xf32, #tpu.memory_space<vmem>>, vector<1x384xf32>
    %7 = vector.broadcast %6 : vector<1x384xf32> to vector<16x384xf32>
    %8 = arith.addf %5, %7 : vector<16x384xf32>
    %c0_6 = arith.constant 0 : index
    %c0_7 = arith.constant 0 : index
    %9 = vector.load %arg10[%c0_6, %c0_7] : memref<16x384xf32, #tpu.memory_space<vmem>>, vector<16x384xf32>
    tpu.vector_store %arg10[%c0_6, %c0_7], %8 {strides = array<i32>} : memref<16x384xf32, #tpu.memory_space<vmem>>, vector<16x384xf32>,
    %c0_8 = arith.constant 0 : index
    %c0_9 = arith.constant 0 : index
    %10 = vector.load %arg7[%c0_8, %c0_9] : memref<1x128xf32, #tpu.memory_space<vmem>>, vector<1x128xf32>
    %11 = vector.shape_cast %10 : vector<1x128xf32> to vector<1x128xf32>
    %12 = vector.broadcast %11 : vector<1x128xf32> to vector<8x128xf32>
    %c0_10 = arith.constant 0 : index
    %c0_11 = arith.constant 0 : index
    %13 = vector.load %arg5[%c0_10, %c0_11] : memref<128x384xf32, #tpu.memory_space<vmem>>, vector<128x384xf32>
    %c0_12 = arith.constant 0 : index
    %c0_13 = arith.constant 0 : index
    %14 = vector.load %arg9[%c0_12, %c0_13] : memref<8x128xf32, #tpu.memory_space<vmem>>, vector<8x128xf32>
    %c0_i32_14 = arith.constant 0 : i32
    %c8_i32 = arith.constant 8 : i32
    %15 = arith.muli %c0_i32_14, %c8_i32 : i32
    %16 = tpu.assume_multiple %15, 8 : i32
    %17 = arith.index_cast %16 : i32 to index
    %c0_15 = arith.constant 0 : index
    %18 = vector.load %arg2[%17, %c0_15] : memref<16x128xf32, #tpu.memory_space<vmem>>, vector<8x128xf32>
    %19 = arith.mulf %14, %18 : vector<8x128xf32>
    %20 = arith.index_cast %16 : i32 to index
    %c0_16 = arith.constant 0 : index
    %21 = vector.load %arg10[%20, %c0_16] : memref<16x384xf32, #tpu.memory_space<vmem>>, vector<8x384xf32>
    %cst_17 = arith.constant dense<0.000000e+00> : vector<8x384xf32>
    %22 = tpu.matmul %19, %13, %cst_17 {dimension_numbers = #tpu.dot_dimension_numbers<[1], [0], [0], [1], [0, 0, 1, 1], [], []>} : vector<8x128xf32>, vector<128x384xf32>, vector<8x384xf32> -> vector<8x384xf32>
    %23 = vector.extract_strided_slice %21 {offsets = [0, 0], sizes = [8, 128], strides = [1, 1]} : vector<8x384xf32> to vector<8x128xf32>
    %24 = vector.extract_strided_slice %22 {offsets = [0, 0], sizes = [8, 128], strides = [1, 1]} : vector<8x384xf32> to vector<8x128xf32>
    %25 = arith.addf %23, %24 : vector<8x128xf32>
    %26 = arith.negf %25 : vector<8x128xf32>
    %27 = math.exp %26 : vector<8x128xf32>
    %cst_18 = arith.constant 1.000000e+00 : f32
    %28 = vector.broadcast %cst_18 : f32 to vector<8x128xf32>
    %29 = arith.addf %28, %27 : vector<8x128xf32>
    %30 = arith.divf %28, %29 : vector<8x128xf32>
    %31 = vector.extract_strided_slice %21 {offsets = [0, 128], sizes = [8, 128], strides = [1, 1]} : vector<8x384xf32> to vector<8x128xf32>
    %32 = vector.extract_strided_slice %22 {offsets = [0, 128], sizes = [8, 128], strides = [1, 1]} : vector<8x384xf32> to vector<8x128xf32>
    %33 = arith.addf %31, %32 : vector<8x128xf32>
    %34 = arith.negf %33 : vector<8x128xf32>
    %35 = math.exp %34 : vector<8x128xf32>
    %cst_19 = arith.constant 1.000000e+00 : f32
    %36 = vector.broadcast %cst_19 : f32 to vector<8x128xf32>
    %37 = arith.addf %36, %35 : vector<8x128xf32>
    %38 = arith.divf %36, %37 : vector<8x128xf32>
    %39 = vector.extract_strided_slice %21 {offsets = [0, 256], sizes = [8, 128], strides = [1, 1]} : vector<8x384xf32> to vector<8x128xf32>
    %40 = vector.extract_strided_slice %22 {offsets = [0, 256], sizes = [8, 128], strides = [1, 1]} : vector<8x384xf32> to vector<8x128xf32>
    %41 = arith.addf %40, %12 : vector<8x128xf32>
    %42 = arith.mulf %30, %41 : vector<8x128xf32>
    %43 = arith.addf %39, %42 : vector<8x128xf32>
    %44 = math.tanh %43 : vector<8x128xf32>
    %45 = arith.subf %19, %44 : vector<8x128xf32>
    %46 = arith.mulf %38, %45 : vector<8x128xf32>
    %47 = arith.addf %44, %46 : vector<8x128xf32>
    %48 = arith.index_cast %16 : i32 to index
    %c0_20 = arith.constant 0 : index
    %49 = vector.load %arg8[%48, %c0_20] : memref<16x128xf32, #tpu.memory_space<vmem>>, vector<8x128xf32>
    tpu.vector_store %arg8[%48, %c0_20], %47 {strides = array<i32>} : memref<16x128xf32, #tpu.memory_space<vmem>>, vector<8x128xf32>,
    %c1_i32 = arith.constant 1 : i32
    %c8_i32_21 = arith.constant 8 : i32
    %50 = arith.muli %c1_i32, %c8_i32_21 : i32
    %51 = tpu.assume_multiple %50, 8 : i32
    %52 = arith.index_cast %51 : i32 to index
    %c0_22 = arith.constant 0 : index
    %53 = vector.load %arg2[%52, %c0_22] : memref<16x128xf32, #tpu.memory_space<vmem>>, vector<8x128xf32>
    %54 = arith.mulf %47, %53 : vector<8x128xf32>
    %55 = arith.index_cast %51 : i32 to index
    %c0_23 = arith.constant 0 : index
    %56 = vector.load %arg10[%55, %c0_23] : memref<16x384xf32, #tpu.memory_space<vmem>>, vector<8x384xf32>
    %cst_24 = arith.constant dense<0.000000e+00> : vector<8x384xf32>
    %57 = tpu.matmul %54, %13, %cst_24 {dimension_numbers = #tpu.dot_dimension_numbers<[1], [0], [0], [1], [0, 0, 1, 1], [], []>} : vector<8x128xf32>, vector<128x384xf32>, vector<8x384xf32> -> vector<8x384xf32>
    %58 = vector.extract_strided_slice %56 {offsets = [0, 0], sizes = [8, 128], strides = [1, 1]} : vector<8x384xf32> to vector<8x128xf32>
    %59 = vector.extract_strided_slice %57 {offsets = [0, 0], sizes = [8, 128], strides = [1, 1]} : vector<8x384xf32> to vector<8x128xf32>
    %60 = arith.addf %58, %59 : vector<8x128xf32>
    %61 = arith.negf %60 : vector<8x128xf32>
    %62 = math.exp %61 : vector<8x128xf32>
    %cst_25 = arith.constant 1.000000e+00 : f32
    %63 = vector.broadcast %cst_25 : f32 to vector<8x128xf32>
    %64 = arith.addf %63, %62 : vector<8x128xf32>
    %65 = arith.divf %63, %64 : vector<8x128xf32>
    %66 = vector.extract_strided_slice %56 {offsets = [0, 128], sizes = [8, 128], strides = [1, 1]} : vector<8x384xf32> to vector<8x128xf32>
    %67 = vector.extract_strided_slice %57 {offsets = [0, 128], sizes = [8, 128], strides = [1, 1]} : vector<8x384xf32> to vector<8x128xf32>
    %68 = arith.addf %66, %67 : vector<8x128xf32>
    %69 = arith.negf %68 : vector<8x128xf32>
    %70 = math.exp %69 : vector<8x128xf32>
    %cst_26 = arith.constant 1.000000e+00 : f32
    %71 = vector.broadcast %cst_26 : f32 to vector<8x128xf32>
    %72 = arith.addf %71, %70 : vector<8x128xf32>
    %73 = arith.divf %71, %72 : vector<8x128xf32>
    %74 = vector.extract_strided_slice %56 {offsets = [0, 256], sizes = [8, 128], strides = [1, 1]} : vector<8x384xf32> to vector<8x128xf32>
    %75 = vector.extract_strided_slice %57 {offsets = [0, 256], sizes = [8, 128], strides = [1, 1]} : vector<8x384xf32> to vector<8x128xf32>
    %76 = arith.addf %75, %12 : vector<8x128xf32>
    %77 = arith.mulf %65, %76 : vector<8x128xf32>
    %78 = arith.addf %74, %77 : vector<8x128xf32>
    %79 = math.tanh %78 : vector<8x128xf32>
    %80 = arith.subf %54, %79 : vector<8x128xf32>
    %81 = arith.mulf %73, %80 : vector<8x128xf32>
    %82 = arith.addf %79, %81 : vector<8x128xf32>
    %83 = arith.index_cast %51 : i32 to index
    %c0_27 = arith.constant 0 : index
    %84 = vector.load %arg8[%83, %c0_27] : memref<16x128xf32, #tpu.memory_space<vmem>>, vector<8x128xf32>
    tpu.vector_store %arg8[%83, %c0_27], %82 {strides = array<i32>} : memref<16x128xf32, #tpu.memory_space<vmem>>, vector<8x128xf32>,
    %c2_i32 = arith.constant 2 : i32
    %c0_28 = arith.constant 0 : index
    %c0_29 = arith.constant 0 : index
    %85 = vector.load %arg9[%c0_28, %c0_29] : memref<8x128xf32, #tpu.memory_space<vmem>>, vector<8x128xf32>
    tpu.vector_store %arg9[%c0_28, %c0_29], %82 {strides = array<i32>} : memref<8x128xf32, #tpu.memory_space<vmem>>, vector<8x128xf32>,
    return
  }
  func.func @transform_0(%arg0: i32) -> (i32, i32) {
    %c0_i32 = arith.constant 0 : i32
    %c0_i32_0 = arith.constant 0 : i32
    return %arg0, %c0_i32 : i32, i32
  }
  func.func @transform_1(%arg0: i32) -> (i32, i32) {
    %c0_i32 = arith.constant 0 : i32
    %c0_i32_0 = arith.constant 0 : i32
    return %arg0, %c0_i32 : i32, i32
  }
  func.func @transform_2(%arg0: i32) -> (i32, i32) {
    %c0_i32 = arith.constant 0 : i32
    %c0_i32_0 = arith.constant 0 : i32
    %c0_i32_1 = arith.constant 0 : i32
    return %c0_i32, %c0_i32_0 : i32, i32
  }
  func.func @transform_3(%arg0: i32) -> (i32, i32) {
    %c0_i32 = arith.constant 0 : i32
    %c0_i32_0 = arith.constant 0 : i32
    %c0_i32_1 = arith.constant 0 : i32
    return %c0_i32, %c0_i32_0 : i32, i32
  }
  func.func @transform_4(%arg0: i32) -> (i32, i32) {
    %c0_i32 = arith.constant 0 : i32
    %c0_i32_0 = arith.constant 0 : i32
    %c0_i32_1 = arith.constant 0 : i32
    return %c0_i32, %c0_i32_0 : i32, i32
  }
  func.func @transform_5(%arg0: i32) -> (i32, i32) {
    %c0_i32 = arith.constant 0 : i32
    %c0_i32_0 = arith.constant 0 : i32
    %c0_i32_1 = arith.constant 0 : i32
    return %c0_i32, %c0_i32_0 : i32, i32
  }
  func.func @transform_6(%arg0: i32) -> (i32, i32) {
    %c0_i32 = arith.constant 0 : i32
    %c0_i32_0 = arith.constant 0 : i32
    %c0_i32_1 = arith.constant 0 : i32
    return %c0_i32, %c0_i32_0 : i32, i32
  }
  func.func @transform_7(%arg0: i32) -> (i32, i32) {
    %c0_i32 = arith.constant 0 : i32
    %c0_i32_0 = arith.constant 0 : i32
    return %arg0, %c0_i32 : i32, i32
  }
}

</mosaic_0001>

<llo_original>
// kernel: tpu_custom_call.1
$region0: #{tpu_custom_call.1}
  #allocation0 [shape = 'u32[]', space=smem, size = 0x4, offset = 0x4, fixed_abs, tag = 'smem constant byte address 0x4 - core index']
  #allocation1 [shape = 'u32[144,128]{1,0:T(1,128)}', space=vmem, size = 0x12000, scoped, tag = 'internal scratch']
  #allocation2 [shape = 'f32[8,128]{1,0:T(8,128)}', space=vmem, size = 0x1000, scoped, tag = 'scratch operand']
  #allocation3 [shape = 'f32[16,384]{1,0:T(8,128)}', space=vmem, size = 0x6000, scoped, tag = 'scratch operand']
  %s0 = inlined_call_operand.vmem [shape: f32[64,32], index: 0, kind: input, shape index: {}]
  %s1 = inlined_call_operand.hbm [shape: f32[64,128], index: 1, kind: input, shape index: {}]
  %s2 = inlined_call_operand.vmem [shape: f32[8,128], index: 2, kind: input, shape index: {}]
  %s3 = inlined_call_operand.vmem [shape: f32[32,384], index: 3, kind: input, shape index: {}]
  %s4 = inlined_call_operand.hbm [shape: f32[128,384], index: 4, kind: input, shape index: {}]
  %s5 = inlined_call_operand.vmem [shape: f32[1,384], index: 5, kind: input, shape index: {}]
  %s6 = inlined_call_operand.vmem [shape: f32[1,128], index: 6, kind: input, shape index: {}]
  %s7 = inlined_call_operand.hbm [shape: f32[64,128], index: 7, kind: output, shape index: {}]
  %s8 = sld [smem:[#allocation0]]
  $region73: #{tpu_custom_call.1} parent=0
    _
  %s10 = ssub.s32 1, %s8
  %s11 = scalar_select 0, %s10, %s8
  $region1: #{tpu_custom_call.1} parent=0
    #allocation4 [shape = 'u8[16384]{0}', space=vmem, size = 0x4000, scoped, tag = 'input window, operand 1']
    #allocation5 [shape = 's32[2]{0}', space=sflag, size = 0x8, scoped, tag = 'scoped memory for tpu_custom_call.1']
    #allocation6 [shape = 's32[2]{0}', space=sflag, size = 0x8, scoped, tag = 'scoped memory for tpu_custom_call.1']
    #allocation7 [shape = 'u8[196608]{0}', space=vmem, size = 0x30000, scoped, tag = 'input window, operand 4, single buffered']
    #allocation8 [shape = 's32[1]{0}', space=sflag, size = 0x4, scoped, tag = 'scoped memory for tpu_custom_call.1']
    #allocation9 [shape = 'u8[16384]{0}', space=vmem, size = 0x4000, scoped, tag = 'output window, operand 0']
    %12 = vsyncpa [#allocation5], 0
    %s13 = scalar_lea.sflag [#allocation5], 1
    %14 = vsyncpa %s13, 0
    %15 = vsyncpa [#allocation8], 0
    %16 = vsyncpa [#allocation6], 0
    %s17 = scalar_lea.sflag [#allocation6], 1
    %18 = vsyncpa %s17, 0
    loop: start=0, step=1, limit=6
    $region2: #{tpu_custom_call.1} parent=1 // loop_pre_header
      _
    $region3: #{tpu_custom_call.1} parent=1 // loop_header
      %s20 = sphi 0, %s24
      %p21 = scmp.ge.s32.totalorder %s20, 6
      %s30 = sphi 0, %s32
      %s33 = sphi 0, %s30
      %s34 = sphi 0, %s33
      %s50 = sphi 0, %s34
      %s56 = sphi 0, %s58
      %s59 = sphi 0, %s56
      %s60 = sphi 0, %s59
      %s76 = sphi 0, %s60
      %s80 = sphi 0, %s80
      %s82 = sphi 0, %s80
      %s83 = sphi 0, %s82
      %s97 = sphi 0, %s83
      %s101 = sphi 0, %s101
      %s103 = sphi 0, %s101
      %s104 = sphi 0, %s103
      %s118 = sphi 0, %s104
      %s122 = sphi 0, %s122
      %s124 = sphi 0, %s122
      %s125 = sphi 0, %s124
      %s139 = sphi 0, %s125
      %s143 = sphi 0, %s143
      %s145 = sphi 0, %s143
      %s146 = sphi 0, %s145
      %s160 = sphi 0, %s146
      %s164 = sphi 0, %s164
      %s166 = sphi 0, %s164
      %s167 = sphi 0, %s166
      %s181 = sphi 0, %s167
      %s187 = sphi 0, %s189
      %s190 = sphi 0, %s187
      %s191 = sphi 0, %s190
      %s207 = sphi 0, %s191
    $region4: #{tpu_custom_call.1} parent=1 // loop_header_branch
      %23 = sbr.rel (%p21) target = $region8
    $region5: #{tpu_custom_call.1} parent=1 // loop_body
      %s25 = ssub.s32 %s20, 1
      %s26 = ssub.s32 %s20, 2
      %s27 = sadd.s32 %s20, 1
      %s28 = ssub.s32 %s20, %s27
      %p29 = scmp.eq.s32.totalorder %s28, 0
      %s31 = sadd.s32 %s30, 1
      %s32 = scalar_select %p29, %s30, %s31
      %p35 = pneg %p29
      %p36 = scmp.eq.s32.totalorder %s20, 3
      %p37 = por %p35, %p36
      %p38 = scmp.ne.s32.totalorder %s30, %s33
      %p39 = scmp.eq.s32.totalorder %s20, 0
      %p40 = por %p38, %p39
      %p41 = scmp.ne.s32.totalorder %s30, %s33
      %p42 = scmp.eq.s32.totalorder %s25, 3
      %p43 = por %p41, %p42
      %p44 = scmp.ne.s32.totalorder %s33, %s34
      %p45 = scmp.eq.s32.totalorder %s25, 0
      %p46 = por %p44, %p45
      %p47 = scmp.ne.s32.totalorder %s33, %s34
      %p48 = scmp.eq.s32.totalorder %s26, 3
      %p49 = por %p47, %p48
      %p51 = scmp.ne.s32.totalorder %s34, %s50
      %p52 = scmp.eq.s32.totalorder %s26, 0
      %p53 = por %p51, %p52
      %s54 = ssub.s32 %s20, %s27
      %p55 = scmp.eq.s32.totalorder %s54, 0
      %s57 = sadd.s32 %s56, 1
      %s58 = scalar_select %p55, %s56, %s57
      %p61 = pneg %p55
      %p62 = scmp.eq.s32.totalorder %s20, 3
      %p63 = por %p61, %p62
      %p64 = scmp.ne.s32.totalorder %s56, %s59
      %p65 = scmp.eq.s32.totalorder %s20, 0
      %p66 = por %p64, %p65
      %p67 = scmp.ne.s32.totalorder %s56, %s59
      %p68 = scmp.eq.s32.totalorder %s25, 3
      %p69 = por %p67, %p68
      %p70 = scmp.ne.s32.totalorder %s59, %s60
      %p71 = scmp.eq.s32.totalorder %s25, 0
      %p72 = por %p70, %p71
      %p73 = scmp.ne.s32.totalorder %s59, %s60
      %p74 = scmp.eq.s32.totalorder %s26, 3
      %p75 = por %p73, %p74
      %p77 = scmp.ne.s32.totalorder %s60, %s76
      %p78 = scmp.eq.s32.totalorder %s26, 0
      %p79 = por %p77, %p78
      %s81 = sadd.s32 %s80, 1
      %p84 = scmp.eq.s32.totalorder %s20, 3
      %p85 = scmp.ne.s32.totalorder %s80, %s82
      %p86 = scmp.eq.s32.totalorder %s20, 0
      %p87 = por %p85, %p86
      %p88 = scmp.ne.s32.totalorder %s80, %s82
      %p89 = scmp.eq.s32.totalorder %s25, 3
      %p90 = por %p88, %p89
      %p91 = scmp.ne.s32.totalorder %s82, %s83
      %p92 = scmp.eq.s32.totalorder %s25, 0
      %p93 = por %p91, %p92
      %p94 = scmp.ne.s32.totalorder %s82, %s83
      %p95 = scmp.eq.s32.totalorder %s26, 3
      %p96 = por %p94, %p95
      %p98 = scmp.ne.s32.totalorder %s83, %s97
      %p99 = scmp.eq.s32.totalorder %s26, 0
      %p100 = por %p98, %p99
      %s102 = sadd.s32 %s101, 1
      %p105 = scmp.eq.s32.totalorder %s20, 3
      %p106 = scmp.ne.s32.totalorder %s101, %s103
      %p107 = scmp.eq.s32.totalorder %s20, 0
      %p108 = por %p106, %p107
      %p109 = scmp.ne.s32.totalorder %s101, %s103
      %p110 = scmp.eq.s32.totalorder %s25, 3
      %p111 = por %p109, %p110
      %p112 = scmp.ne.s32.totalorder %s103, %s104
      %p113 = scmp.eq.s32.totalorder %s25, 0
      %p114 = por %p112, %p113
      %p115 = scmp.ne.s32.totalorder %s103, %s104
      %p116 = scmp.eq.s32.totalorder %s26, 3
      %p117 = por %p115, %p116
      %p119 = scmp.ne.s32.totalorder %s104, %s118
      %p120 = scmp.eq.s32.totalorder %s26, 0
      %p121 = por %p119, %p120
      %s123 = sadd.s32 %s122, 1
      %p126 = scmp.eq.s32.totalorder %s20, 3
      %p127 = scmp.ne.s32.totalorder %s122, %s124
      %p128 = scmp.eq.s32.totalorder %s20, 0
      %p129 = por %p127, %p128
      %p130 = scmp.ne.s32.totalorder %s122, %s124
      %p131 = scmp.eq.s32.totalorder %s25, 3
      %p132 = por %p130, %p131
      %p133 = scmp.ne.s32.totalorder %s124, %s125
      %p134 = scmp.eq.s32.totalorder %s25, 0
      %p135 = por %p133, %p134
      %p136 = scmp.ne.s32.totalorder %s124, %s125
      %p137 = scmp.eq.s32.totalorder %s26, 3
      %p138 = por %p136, %p137
      %p140 = scmp.ne.s32.totalorder %s125, %s139
      %p141 = scmp.eq.s32.totalorder %s26, 0
      %p142 = por %p140, %p141
      %s144 = sadd.s32 %s143, 1
      %p147 = scmp.eq.s32.totalorder %s20, 3
      %p148 = scmp.ne.s32.totalorder %s143, %s145
      %p149 = scmp.eq.s32.totalorder %s20, 0
      %p150 = por %p148, %p149
      %p151 = scmp.ne.s32.totalorder %s143, %s145
      %p152 = scmp.eq.s32.totalorder %s25, 3
      %p153 = por %p151, %p152
      %p154 = scmp.ne.s32.totalorder %s145, %s146
      %p155 = scmp.eq.s32.totalorder %s25, 0
      %p156 = por %p154, %p155
      %p157 = scmp.ne.s32.totalorder %s145, %s146
      %p158 = scmp.eq.s32.totalorder %s26, 3
      %p159 = por %p157, %p158
      %p161 = scmp.ne.s32.totalorder %s146, %s160
      %p162 = scmp.eq.s32.totalorder %s26, 0
      %p163 = por %p161, %p162
      %s165 = sadd.s32 %s164, 1
      %p168 = scmp.eq.s32.totalorder %s20, 3
      %p169 = scmp.ne.s32.totalorder %s164, %s166
      %p170 = scmp.eq.s32.totalorder %s20, 0
      %p171 = por %p169, %p170
      %p172 = scmp.ne.s32.totalorder %s164, %s166
      %p173 = scmp.eq.s32.totalorder %s25, 3
      %p174 = por %p172, %p173
      %p175 = scmp.ne.s32.totalorder %s166, %s167
      %p176 = scmp.eq.s32.totalorder %s25, 0
      %p177 = por %p175, %p176
      %p178 = scmp.ne.s32.totalorder %s166, %s167
      %p179 = scmp.eq.s32.totalorder %s26, 3
      %p180 = por %p178, %p179
      %p182 = scmp.ne.s32.totalorder %s167, %s181
      %p183 = scmp.eq.s32.totalorder %s26, 0
      %p184 = por %p182, %p183
      %s185 = ssub.s32 %s20, %s27
      %p186 = scmp.eq.s32.totalorder %s185, 0
      %s188 = sadd.s32 %s187, 1
      %s189 = scalar_select %p186, %s187, %s188
      %p192 = pneg %p186
      %p193 = scmp.eq.s32.totalorder %s20, 3
      %p194 = por %p192, %p193
      %p195 = scmp.ne.s32.totalorder %s187, %s190
      %p196 = scmp.eq.s32.totalorder %s20, 0
      %p197 = por %p195, %p196
      %p198 = scmp.ne.s32.totalorder %s187, %s190
      %p199 = scmp.eq.s32.totalorder %s25, 3
      %p200 = por %p198, %p199
      %p201 = scmp.ne.s32.totalorder %s190, %s191
      %p202 = scmp.eq.s32.totalorder %s25, 0
      %p203 = por %p201, %p202
      %p204 = scmp.ne.s32.totalorder %s190, %s191
      %p205 = scmp.eq.s32.totalorder %s26, 3
      %p206 = por %p204, %p205
      %p208 = scmp.ne.s32.totalorder %s191, %s207
      %p209 = scmp.eq.s32.totalorder %s26, 0
      %p210 = por %p208, %p209
      %p211 = scmp.le.s32.totalorder 1, %s20
      %p212 = scmp.lt.s32.totalorder %s20, 5
      %p213 = pnand %p211, %p212
      %p214 = pneg %p213
      // Predicated region
      $region9: #{tpu_custom_call.1} parent=5 // pred_check
        _
      $region10: #{tpu_custom_call.1} parent=5 // pred_check_branch
        %216 = sbr.rel (%p213) target = $region12
      $region11: #{tpu_custom_call.1} parent=5 // pred_region
        %s217 = ssub.s32 %s20, 1
        // Predicated region
        $region13: #{tpu_custom_call.1} parent=11 // pred_check
          %p218 = pneg %p93
        $region14: #{tpu_custom_call.1} parent=11 // pred_check_branch
          %220 = sbr.rel (%p218) target = $region16
        $region15: #{tpu_custom_call.1} parent=11 // pred_region
          _
        $region16: #{tpu_custom_call.1} parent=11 // pred_fallthru
          _
        // Predicated region
        $region17: #{tpu_custom_call.1} parent=11 // pred_check
          %p221 = pneg %p114
        $region18: #{tpu_custom_call.1} parent=11 // pred_check_branch
          %223 = sbr.rel (%p221) target = $region20
        $region19: #{tpu_custom_call.1} parent=11 // pred_region
          _
        $region20: #{tpu_custom_call.1} parent=11 // pred_fallthru
          _
        // Predicated region
        $region21: #{tpu_custom_call.1} parent=11 // pred_check
          %p224 = pneg %p135
        $region22: #{tpu_custom_call.1} parent=11 // pred_check_branch
          %226 = sbr.rel (%p224) target = $region24
        $region23: #{tpu_custom_call.1} parent=11 // pred_region
          %s228 = ssub.s32 6144, 6144
          %229 = vsyncadd [#allocation8], %s228
          %s230 = sshll.u32 [#allocation7], 4
          %s231 = int_to_ptr.vmem [resolvable:$true] %s230
          %236 = dma.hbm_to_vmem [thread:$0]  %s4, 6144, %s231, [#allocation8], 384, 384, 24
        $region24: #{tpu_custom_call.1} parent=11 // pred_fallthru
          _
        // Predicated region
        $region25: #{tpu_custom_call.1} parent=11 // pred_check
          %p237 = pneg %p156
        $region26: #{tpu_custom_call.1} parent=11 // pred_check_branch
          %239 = sbr.rel (%p237) target = $region28
        $region27: #{tpu_custom_call.1} parent=11 // pred_region
          _
        $region28: #{tpu_custom_call.1} parent=11 // pred_fallthru
          _
        // Predicated region
        $region29: #{tpu_custom_call.1} parent=11 // pred_check
          %p240 = pneg %p177
        $region30: #{tpu_custom_call.1} parent=11 // pred_check_branch
          %242 = sbr.rel (%p240) target = $region32
        $region31: #{tpu_custom_call.1} parent=11 // pred_region
          _
        $region32: #{tpu_custom_call.1} parent=11 // pred_fallthru
          _
      $region12: #{tpu_custom_call.1} parent=5 // pred_fallthru
        _
      %p243 = scmp.lt.s32.totalorder %s20, 4
      // Predicated region
      $region33: #{tpu_custom_call.1} parent=5 // pred_check
        %p244 = pneg %p243
      $region34: #{tpu_custom_call.1} parent=5 // pred_check_branch
        %246 = sbr.rel (%p244) target = $region36
      $region35: #{tpu_custom_call.1} parent=5 // pred_region
        // Predicated region
        $region37: #{tpu_custom_call.1} parent=35 // pred_check
          %p247 = pneg %p40
        $region38: #{tpu_custom_call.1} parent=35 // pred_check_branch
          %249 = sbr.rel (%p247) target = $region40
        $region39: #{tpu_custom_call.1} parent=35 // pred_region
          %s250 = smul.u32 2, %s20
          %p251 = scmp.lt.s32.totalorder %s250, 7
          %s252 = scalar_select %p251, %s250, 7
          %s253 = smul.addr %s252, 8
          %s254 = scalar_lea.vmem %s0, %s253
          %s255 = smul.u32 2, %s20
        $region40: #{tpu_custom_call.1} parent=35 // pred_fallthru
          _
        // Predicated region
        $region41: #{tpu_custom_call.1} parent=35 // pred_check
          %p256 = pneg %p66
        $region42: #{tpu_custom_call.1} parent=35 // pred_check_branch
          %258 = sbr.rel (%p256) target = $region44
        $region43: #{tpu_custom_call.1} parent=35 // pred_region
          %s259 = sand.u32 %s56, 1
          %s260 = scalar_lea.sflag [#allocation5], %s259
          %s261 = sand.u32 %s56, 1
          %s262 = smul.addr %s261, 16
          %s263 = scalar_lea.vmem [#allocation4], %s262
          %s264 = smul.u32 2, %s20
          %s266 = ssub.s32 256, 256
          %267 = vsyncadd %s260, %s266
          %s268 = smul.addr %s264, 128
          %s269 = scalar_lea.hbm %s1, %s268
          %s270 = sshll.u32 %s263, 4
          %s271 = int_to_ptr.vmem [resolvable:$true] %s270
          %276 = dma.hbm_to_vmem [thread:$0]  %s269, 256, %s271, %s260, 128, 128, 8
        $region44: #{tpu_custom_call.1} parent=35 // pred_fallthru
          _
      $region36: #{tpu_custom_call.1} parent=5 // pred_fallthru
        _
      %p277 = scmp.le.s32.totalorder 1, %s20
      %p278 = scmp.lt.s32.totalorder %s20, 5
      %p279 = pnand %p277, %p278
      %p280 = pneg %p279
      // Predicated region
      $region45: #{tpu_custom_call.1} parent=5 // pred_check
        _
      $region46: #{tpu_custom_call.1} parent=5 // pred_check_branch
        %282 = sbr.rel (%p279) target = $region48
      $region47: #{tpu_custom_call.1} parent=5 // pred_region
        %s283 = ssub.s32 %s20, 1
        %s284 = sand.u32 %s59, 1
        %s285 = scalar_lea.sflag [#allocation5], %s284
        %s286 = sand.u32 %s59, 1
        %s287 = smul.addr %s286, 16
        %s288 = scalar_lea.vmem [#allocation4], %s287
        // Predicated region
        $region49: #{tpu_custom_call.1} parent=47 // pred_check
          %p289 = pneg %p72
        $region50: #{tpu_custom_call.1} parent=47 // pred_check_branch
          %291 = sbr.rel (%p289) target = $region52
        $region51: #{tpu_custom_call.1} parent=47 // pred_region
          %292 = dma.done %s285, 256
        $region52: #{tpu_custom_call.1} parent=47 // pred_fallthru
          _
        // Predicated region
        $region53: #{tpu_custom_call.1} parent=47 // pred_check
          %p293 = pneg %p135
        $region54: #{tpu_custom_call.1} parent=47 // pred_check_branch
          %295 = sbr.rel (%p293) target = $region56
        $region55: #{tpu_custom_call.1} parent=47 // pred_region
          %296 = dma.done [#allocation8], 6144
        $region56: #{tpu_custom_call.1} parent=47 // pred_fallthru
          _
        %s297 = smul.u32 2, %s25
        %p298 = scmp.lt.s32.totalorder %s297, 7
        %s299 = scalar_select %p298, %s297, 7
        %s300 = smul.addr %s299, 8
        %s301 = scalar_lea.vmem %s0, %s300
        %p302 = pneg %p46
        %p303 = pneg %p43
        %s304 = sand.u32 %s59, 1
        %s305 = scalar_lea.sflag [#allocation5], %s304
        %s306 = sand.u32 %s59, 1
        %s307 = smul.addr %s306, 16
        %s308 = scalar_lea.vmem [#allocation4], %s307
        %p309 = pneg %p72
        %p310 = pneg %p69
        %p311 = pneg %p93
        %p312 = pneg %p90
        %p313 = pneg %p114
        %p314 = pneg %p111
        %p315 = pneg %p135
        %p316 = pneg %p132
        %p317 = pneg %p156
        %p318 = pneg %p153
        %p319 = pneg %p177
        %p320 = pneg %p174
        %p321 = pneg %p203
        %p322 = pneg %p200
        %s323 = sand.u32 %s190, 1
        %s324 = scalar_lea.sflag [#allocation6], %s323
        %s325 = sand.u32 %s190, 1
        %s326 = smul.addr %s325, 16
        %s327 = scalar_lea.vmem [#allocation9], %s326
        %s328 = smul.u32 2, %s25
        %p329 = scmp.lt.s32.totalorder %s328, 7
        %s330 = scalar_select %p329, %s328, 7
        %s331 = smul.addr %s330, 8
        %s332 = scalar_lea.vmem %s0, %s331
        %s333 = smul.u32 2, %s25
        %s334 = smul.u32 2, %s25
        %s335 = smul.u32 2, %s25
        %p336 = scmp.eq.s32.totalorder %s25, 0
        // Predicated region
        $region57: #{tpu_custom_call.1} parent=47 // pred_check
          %p337 = pneg %p336
        $region58: #{tpu_custom_call.1} parent=47 // pred_check_branch
          %339 = sbr.rel (%p337) target = $region60
        $region59: #{tpu_custom_call.1} parent=47 // pred_region
          %v340 = vld [vmem:[%s2] sm:$0xff]
          %341 = vst [vmem:[#allocation2] sm:$0xff] %v340
        $region60: #{tpu_custom_call.1} parent=47 // pred_fallthru
          _
        %v342 = vld [vmem:[%s332] sm:$0xff]
        %v343 = vld [vmem:[%s332 + $0x8] sm:$0xff]
        %v344 = vld [vmem:[%s3] sm:$0xff]
        %v345 = vld [vmem:[%s3 + $0x8] sm:$0xff]
        %v346 = vld [vmem:[%s3 + $0x10] sm:$0xff]
        %v347 = vld [vmem:[%s3 + $0x18] sm:$0xff]
        %v348 = vld [vmem:[%s3 + $0x20] sm:$0xff]
        %v349 = vld [vmem:[%s3 + $0x28] sm:$0xff]
        %v350 = vld [vmem:[%s3 + $0x30] sm:$0xff]
        %v351 = vld [vmem:[%s3 + $0x38] sm:$0xff]
        %v352 = vld [vmem:[%s3 + $0x40] sm:$0xff]
        %v353 = vld [vmem:[%s3 + $0x48] sm:$0xff]
        %v354 = vld [vmem:[%s3 + $0x50] sm:$0xff]
        %v355 = vld [vmem:[%s3 + $0x58] sm:$0xff]
        %v356 = vld [vmem:[%s5] sm:$0x7]
        %v358 = vlaneseq
        %v359 = vshrl.u32 %v358, 7
        %v360 = vsub.s32 0, %v359
        %v361 = vrot.slane %v356, %v360
        %v362 = vlaneseq
        %v363 = vshrl.u32 %v362, 7
        %v364 = vsub.s32 1, %v363
        %v365 = vrot.slane %v356, %v364
        %v366 = vlaneseq
        %v367 = vshrl.u32 %v366, 7
        %v368 = vsub.s32 2, %v367
        %v369 = vrot.slane %v356, %v368
        %vm373 = vcmask 261120
        %v375 = vsel %vm373, %v342, 0
        %v378 = vsel %vm373, %v343, 0
        %380 = vmatprep.subr.mxu0 %v345
        %381 = vmatpush1.msra.mxu0 %v344
        %382 = vmatprep.subr.mxu0 %v348
        %383 = vmatpush1.msra.mxu0 %v347
        %384 = vmatprep.subr.mxu0 %v351
        %385 = vmatpush1.msra.mxu0 %v350
        %386 = vmatprep.subr.mxu0 %v354
        %387 = vmatpush1.msra.mxu0 %v353
        %388 = vmatprep.subr.mxu0 0.0
        %389 = vmatpush1.msra.mxu0 0.0
        %390 = vmatprep.subr.mxu0 0.0
        %391 = vmatpush1.msra.mxu0 0.0
        %392 = vmatprep.subr.mxu0 0.0
        %393 = vmatpush1.msra.mxu0 0.0
        %394 = vmatprep.subr.mxu0 0.0
        %395 = vmatpush1.msra.mxu0 0.0
        %396 = vmatprep.subr.mxu0 0.0
        %397 = vmatpush1.msra.mxu0 0.0
        %398 = vmatprep.subr.mxu0 0.0
        %399 = vmatpush1.msra.mxu0 0.0
        %400 = vmatprep.subr.mxu0 0.0
        %401 = vmatpush1.msra.mxu0 0.0
        %402 = vmatprep.subr.mxu0 0.0
        %403 = vmatpush1.msra.mxu0 0.0
        %404 = vmatprep.subr.mxu0 0.0
        %405 = vmatpush1.msra.mxu0 0.0
        %406 = vmatprep.subr.mxu0 0.0
        %407 = vmatpush1.msra.mxu0 0.0
        %408 = vmatprep.subr.mxu0 0.0
        %409 = vmatpush1.msra.mxu0 0.0
        %410 = vmatprep.subr.mxu0 0.0
        %411 = vmatpush1.msra.mxu0 0.0
        %412 = vmatprep.subr.mxu0 0.0
        %413 = vmatpush1.msra.mxu0 0.0
        %414 = vmatprep.subr.mxu0 0.0
        %415 = vmatpush1.msra.mxu0 0.0
        %416 = vmatprep.subr.mxu0 0.0
        %417 = vmatpush1.msra.mxu0 0.0
        %418 = vmatprep.subr.mxu0 0.0
        %419 = vmatpush1.msra.mxu0 0.0
        %420 = vmatprep.subr.mxu0 0.0
        %421 = vmatpush1.msra.mxu0 0.0
        %422 = vmatprep.subr.mxu0 0.0
        %423 = vmatpush1.msra.mxu0 0.0
        %424 = vmatprep.subr.mxu0 0.0
        %425 = vmatpush1.msra.mxu0 0.0
        %426 = vmatprep.subr.mxu0 0.0
        %427 = vmatpush1.msra.mxu0 0.0
        %428 = vmatprep.subr.mxu0 0.0
        %429 = vmatpush1.msra.mxu0 0.0
        %430 = vmatprep.subr.mxu0 0.0
        %431 = vmatpush1.msra.mxu0 0.0
        %432 = vmatprep.subr.mxu0 0.0
        %433 = vmatpush1.msra.mxu0 0.0
        %434 = vmatprep.subr.mxu0 0.0
        %435 = vmatpush1.msra.mxu0 0.0
        %436 = vmatprep.subr.mxu0 0.0
        %437 = vmatpush1.msra.mxu0 0.0
        %438 = vmatprep.subr.mxu0 0.0
        %439 = vmatpush1.msra.mxu0 0.0
        %440 = vmatprep.subr.mxu0 0.0
        %441 = vmatpush1.msra.mxu0 0.0
        %442 = vmatprep.subr.mxu0 0.0
        %443 = vmatpush1.msra.mxu0 0.0
        %444 = vmatprep.mubr.f32.mxu0 0.0
        %445 = vmatmul.mubr.f32.gmra.mrb[0].mxu0 %v375
        %v446 = vpop.f32.mrb[0].mxu0
        %v447 = vadd.f32 %v361, %v446
        %v448 = vpop.f32.mrb[0].mxu0
        %v449 = vadd.f32 %v365, %v448
        %450 = vmatprep.mubr.f32.mxu0 0.0
        %451 = vmatmul.mubr.f32.gmra.mrb[0].mxu0 %v378
        %v452 = vpop.f32.mrb[0].mxu0
        %v453 = vadd.f32 %v361, %v452
        %v454 = vpop.f32.mrb[0].mxu0
        %v455 = vadd.f32 %v365, %v454
        %456 = vdwg.mxu0
        %457 = vmatprep.subr.mxu0 0.0
        %458 = vmatpush1.msra.mxu0 %v346
        %459 = vmatprep.subr.mxu0 0.0
        %460 = vmatpush1.msra.mxu0 %v349
        %461 = vmatprep.subr.mxu0 0.0
        %462 = vmatpush1.msra.mxu0 %v352
        %463 = vmatprep.subr.mxu0 0.0
        %464 = vmatpush1.msra.mxu0 %v355
        %465 = vmatprep.subr.mxu0 0.0
        %466 = vmatpush1.msra.mxu0 0.0
        %467 = vmatprep.subr.mxu0 0.0
        %468 = vmatpush1.msra.mxu0 0.0
        %469 = vmatprep.subr.mxu0 0.0
        %470 = vmatpush1.msra.mxu0 0.0
        %471 = vmatprep.subr.mxu0 0.0
        %472 = vmatpush1.msra.mxu0 0.0
        %473 = vmatprep.subr.mxu0 0.0
        %474 = vmatpush1.msra.mxu0 0.0
        %475 = vmatprep.subr.mxu0 0.0
        %476 = vmatpush1.msra.mxu0 0.0
        %477 = vmatprep.subr.mxu0 0.0
        %478 = vmatpush1.msra.mxu0 0.0
        %479 = vmatprep.subr.mxu0 0.0
        %480 = vmatpush1.msra.mxu0 0.0
        %481 = vmatprep.subr.mxu0 0.0
        %482 = vmatpush1.msra.mxu0 0.0
        %483 = vmatprep.subr.mxu0 0.0
        %484 = vmatpush1.msra.mxu0 0.0
        %485 = vmatprep.subr.mxu0 0.0
        %486 = vmatpush1.msra.mxu0 0.0
        %487 = vmatprep.subr.mxu0 0.0
        %488 = vmatpush1.msra.mxu0 0.0
        %489 = vmatprep.subr.mxu0 0.0
        %490 = vmatpush1.msra.mxu0 0.0
        %491 = vmatprep.subr.mxu0 0.0
        %492 = vmatpush1.msra.mxu0 0.0
        %493 = vmatprep.subr.mxu0 0.0
        %494 = vmatpush1.msra.mxu0 0.0
        %495 = vmatprep.subr.mxu0 0.0
        %496 = vmatpush1.msra.mxu0 0.0
        %497 = vmatprep.subr.mxu0 0.0
        %498 = vmatpush1.msra.mxu0 0.0
        %499 = vmatprep.subr.mxu0 0.0
        %500 = vmatpush1.msra.mxu0 0.0
        %501 = vmatprep.subr.mxu0 0.0
        %502 = vmatpush1.msra.mxu0 0.0
        %503 = vmatprep.subr.mxu0 0.0
        %504 = vmatpush1.msra.mxu0 0.0
        %505 = vmatprep.subr.mxu0 0.0
        %506 = vmatpush1.msra.mxu0 0.0
        %507 = vmatprep.subr.mxu0 0.0
        %508 = vmatpush1.msra.mxu0 0.0
        %509 = vmatprep.subr.mxu0 0.0
        %510 = vmatpush1.msra.mxu0 0.0
        %511 = vmatprep.subr.mxu0 0.0
        %512 = vmatpush1.msra.mxu0 0.0
        %513 = vmatprep.subr.mxu0 0.0
        %514 = vmatpush1.msra.mxu0 0.0
        %515 = vmatprep.subr.mxu0 0.0
        %516 = vmatpush1.msra.mxu0 0.0
        %517 = vmatprep.subr.mxu0 0.0
        %518 = vmatpush1.msra.mxu0 0.0
        %519 = vmatprep.subr.mxu0 0.0
        %520 = vmatpush1.msra.mxu0 0.0
        %521 = vmatprep.mubr.f32.mxu0 0.0
        %522 = vmatmul.mubr.f32.gmra.mrb[0].mxu0 %v375
        %v523 = vpop.f32.mrb[0].mxu0
        %v524 = vadd.f32 %v369, %v523
        %v525 = vpop.f32.mrb[0].mxu0
        %526 = vmatprep.mubr.f32.mxu0 0.0
        %527 = vmatmul.mubr.f32.gmra.mrb[0].mxu0 %v378
        %v528 = vpop.f32.mrb[0].mxu0
        %v529 = vadd.f32 %v369, %v528
        %v530 = vpop.f32.mrb[0].mxu0
        %531 = vdwg.mxu0
        %532 = vst [vmem:[#allocation3] sm:$0xff] %v447
        %533 = vst [vmem:[#allocation3 + $0x8] sm:$0xff] %v449
        %534 = vst [vmem:[#allocation3 + $0x10] sm:$0xff] %v524
        %535 = vst [vmem:[#allocation3 + $0x18] sm:$0xff] %v453
        %536 = vst [vmem:[#allocation3 + $0x20] sm:$0xff] %v455
        %537 = vst [vmem:[#allocation3 + $0x28] sm:$0xff] %v529
        %v538 = vld [vmem:[%s6] sm:$0x1]
        %v540 = vlaneseq
        %v541 = vshrl.u32 %v540, 7
        %v542 = vsub.s32 0, %v541
        %v543 = vrot.slane %v538, %v542
        %v545 = vld [vmem:[#allocation7] sm:$0xff]
        %v546 = vld [vmem:[#allocation7 + $0x8] sm:$0xff]
        %v547 = vld [vmem:[#allocation7 + $0x10] sm:$0xff]
        %v548 = vld [vmem:[#allocation7 + $0x18] sm:$0xff]
        %v549 = vld [vmem:[#allocation7 + $0x20] sm:$0xff]
        %v550 = vld [vmem:[#allocation7 + $0x28] sm:$0xff]
        %v551 = vld [vmem:[#allocation7 + $0x30] sm:$0xff]
        %v552 = vld [vmem:[#allocation7 + $0x38] sm:$0xff]
        %v553 = vld [vmem:[#allocation7 + $0x40] sm:$0xff]
        %v554 = vld [vmem:[#allocation7 + $0x48] sm:$0xff]
        %v555 = vld [vmem:[#allocation7 + $0x50] sm:$0xff]
        %v556 = vld [vmem:[#allocation7 + $0x58] sm:$0xff]
        %v557 = vld [vmem:[#allocation7 + $0x60] sm:$0xff]
        %v558 = vld [vmem:[#allocation7 + $0x68] sm:$0xff]
        %v559 = vld [vmem:[#allocation7 + $0x70] sm:$0xff]
        %v560 = vld [vmem:[#allocation7 + $0x78] sm:$0xff]
        %v561 = vld [vmem:[#allocation7 + $0x80] sm:$0xff]
        %v562 = vld [vmem:[#allocation7 + $0x88] sm:$0xff]
        %v563 = vld [vmem:[#allocation7 + $0x90] sm:$0xff]
        %v564 = vld [vmem:[#allocation7 + $0x98] sm:$0xff]
        %v565 = vld [vmem:[#allocation7 + $0xa0] sm:$0xff]
        %v566 = vld [vmem:[#allocation7 + $0xa8] sm:$0xff]
        %v567 = vld [vmem:[#allocation7 + $0xb0] sm:$0xff]
        %v568 = vld [vmem:[#allocation7 + $0xb8] sm:$0xff]
        %v569 = vld [vmem:[#allocation7 + $0xc0] sm:$0xff]
        %v570 = vld [vmem:[#allocation7 + $0xc8] sm:$0xff]
        %v571 = vld [vmem:[#allocation7 + $0xd0] sm:$0xff]
        %v572 = vld [vmem:[#allocation7 + $0xd8] sm:$0xff]
        %v573 = vld [vmem:[#allocation7 + $0xe0] sm:$0xff]
        %v574 = vld [vmem:[#allocation7 + $0xe8] sm:$0xff]
        %v575 = vld [vmem:[#allocation7 + $0xf0] sm:$0xff]
        %v576 = vld [vmem:[#allocation7 + $0xf8] sm:$0xff]
        %v577 = vld [vmem:[#allocation7 + $0x100] sm:$0xff]
        %v578 = vld [vmem:[#allocation7 + $0x108] sm:$0xff]
        %v579 = vld [vmem:[#allocation7 + $0x110] sm:$0xff]
        %v580 = vld [vmem:[#allocation7 + $0x118] sm:$0xff]
        %v581 = vld [vmem:[#allocation7 + $0x120] sm:$0xff]
        %v582 = vld [vmem:[#allocation7 + $0x128] sm:$0xff]
        %v583 = vld [vmem:[#allocation7 + $0x130] sm:$0xff]
        %v584 = vld [vmem:[#allocation7 + $0x138] sm:$0xff]
        %v585 = vld [vmem:[#allocation7 + $0x140] sm:$0xff]
        %v586 = vld [vmem:[#allocation7 + $0x148] sm:$0xff]
        %v587 = vld [vmem:[#allocation7 + $0x150] sm:$0xff]
        %v588 = vld [vmem:[#allocation7 + $0x158] sm:$0xff]
        %v589 = vld [vmem:[#allocation7 + $0x160] sm:$0xff]
        %v590 = vld [vmem:[#allocation7 + $0x168] sm:$0xff]
        %v591 = vld [vmem:[#allocation7 + $0x170] sm:$0xff]
        %v592 = vld [vmem:[#allocation7 + $0x178] sm:$0xff]
        %v593 = vld [vmem:[#allocation2] sm:$0xff]
        %v594 = vld [vmem:[%s288] sm:$0xff]
        %v595 = vmul.f32 %v593, %v594
        %s596 = smul.u32 0, 3
        %s597 = smul.addr %s596, 8
        %s598 = scalar_lea.vmem [#allocation3], %s597
        %v599 = vld [vmem:[%s598] sm:$0xff]
        %v600 = vld [vmem:[%s598 + $0x8] sm:$0xff]
        %v601 = vld [vmem:[%s598 + $0x10] sm:$0xff]
        %602 = vmatprep.subr.mxu0 %v546
        %603 = vmatpush1.msra.mxu0 %v545
        %604 = vmatprep.subr.mxu0 %v549
        %605 = vmatpush1.msra.mxu0 %v548
        %606 = vmatprep.subr.mxu0 %v552
        %607 = vmatpush1.msra.mxu0 %v551
        %608 = vmatprep.subr.mxu0 %v555
        %609 = vmatpush1.msra.mxu0 %v554
        %610 = vmatprep.subr.mxu0 %v558
        %611 = vmatpush1.msra.mxu0 %v557
        %612 = vmatprep.subr.mxu0 %v561
        %613 = vmatpush1.msra.mxu0 %v560
        %614 = vmatprep.subr.mxu0 %v564
        %615 = vmatpush1.msra.mxu0 %v563
        %616 = vmatprep.subr.mxu0 %v567
        %617 = vmatpush1.msra.mxu0 %v566
        %618 = vmatprep.subr.mxu0 %v570
        %619 = vmatpush1.msra.mxu0 %v569
        %620 = vmatprep.subr.mxu0 %v573
        %621 = vmatpush1.msra.mxu0 %v572
        %622 = vmatprep.subr.mxu0 %v576
        %623 = vmatpush1.msra.mxu0 %v575
        %624 = vmatprep.subr.mxu0 %v579
        %625 = vmatpush1.msra.mxu0 %v578
        %626 = vmatprep.subr.mxu0 %v582
        %627 = vmatpush1.msra.mxu0 %v581
        %628 = vmatprep.subr.mxu0 %v585
        %629 = vmatpush1.msra.mxu0 %v584
        %630 = vmatprep.subr.mxu0 %v588
        %631 = vmatpush1.msra.mxu0 %v587
        %632 = vmatprep.subr.mxu0 %v591
        %633 = vmatpush1.msra.mxu0 %v590
        %634 = vmatprep.subr.mxu0 0.0
        %635 = vmatpush1.msra.mxu0 0.0
        %636 = vmatprep.subr.mxu0 0.0
        %637 = vmatpush1.msra.mxu0 0.0
        %638 = vmatprep.subr.mxu0 0.0
        %639 = vmatpush1.msra.mxu0 0.0
        %640 = vmatprep.subr.mxu0 0.0
        %641 = vmatpush1.msra.mxu0 0.0
        %642 = vmatprep.subr.mxu0 0.0
        %643 = vmatpush1.msra.mxu0 0.0
        %644 = vmatprep.subr.mxu0 0.0
        %645 = vmatpush1.msra.mxu0 0.0
        %646 = vmatprep.subr.mxu0 0.0
        %647 = vmatpush1.msra.mxu0 0.0
        %648 = vmatprep.subr.mxu0 0.0
        %649 = vmatpush1.msra.mxu0 0.0
        %650 = vmatprep.subr.mxu0 0.0
        %651 = vmatpush1.msra.mxu0 0.0
        %652 = vmatprep.subr.mxu0 0.0
        %653 = vmatpush1.msra.mxu0 0.0
        %654 = vmatprep.subr.mxu0 0.0
        %655 = vmatpush1.msra.mxu0 0.0
        %656 = vmatprep.subr.mxu0 0.0
        %657 = vmatpush1.msra.mxu0 0.0
        %658 = vmatprep.subr.mxu0 0.0
        %659 = vmatpush1.msra.mxu0 0.0
        %660 = vmatprep.subr.mxu0 0.0
        %661 = vmatpush1.msra.mxu0 0.0
        %662 = vmatprep.subr.mxu0 0.0
        %663 = vmatpush1.msra.mxu0 0.0
        %664 = vmatprep.subr.mxu0 0.0
        %665 = vmatpush1.msra.mxu0 0.0
        %666 = vmatprep.mubr.f32.mxu0 0.0
        %667 = vmatmul.mubr.f32.gmra.mrb[0].mxu0 %v595
        %v668 = vpop.f32.mrb[0].mxu0
        %v669 = vadd.f32 0.0, %v668
        %v670 = vpop.f32.mrb[0].mxu0
        %v671 = vadd.f32 0.0, %v670
        %672 = vdwg.mxu0
        %673 = vmatprep.subr.mxu0 0.0
        %674 = vmatpush1.msra.mxu0 %v547
        %675 = vmatprep.subr.mxu0 0.0
        %676 = vmatpush1.msra.mxu0 %v550
        %677 = vmatprep.subr.mxu0 0.0
        %678 = vmatpush1.msra.mxu0 %v553
        %679 = vmatprep.subr.mxu0 0.0
        %680 = vmatpush1.msra.mxu0 %v556
        %681 = vmatprep.subr.mxu0 0.0
        %682 = vmatpush1.msra.mxu0 %v559
        %683 = vmatprep.subr.mxu0 0.0
        %684 = vmatpush1.msra.mxu0 %v562
        %685 = vmatprep.subr.mxu0 0.0
        %686 = vmatpush1.msra.mxu0 %v565
        %687 = vmatprep.subr.mxu0 0.0
        %688 = vmatpush1.msra.mxu0 %v568
        %689 = vmatprep.subr.mxu0 0.0
        %690 = vmatpush1.msra.mxu0 %v571
        %691 = vmatprep.subr.mxu0 0.0
        %692 = vmatpush1.msra.mxu0 %v574
        %693 = vmatprep.subr.mxu0 0.0
        %694 = vmatpush1.msra.mxu0 %v577
        %695 = vmatprep.subr.mxu0 0.0
        %696 = vmatpush1.msra.mxu0 %v580
        %697 = vmatprep.subr.mxu0 0.0
        %698 = vmatpush1.msra.mxu0 %v583
        %699 = vmatprep.subr.mxu0 0.0
        %700 = vmatpush1.msra.mxu0 %v586
        %701 = vmatprep.subr.mxu0 0.0
        %702 = vmatpush1.msra.mxu0 %v589
        %703 = vmatprep.subr.mxu0 0.0
        %704 = vmatpush1.msra.mxu0 %v592
        %705 = vmatprep.subr.mxu0 0.0
        %706 = vmatpush1.msra.mxu0 0.0
        %707 = vmatprep.subr.mxu0 0.0
        %708 = vmatpush1.msra.mxu0 0.0
        %709 = vmatprep.subr.mxu0 0.0
        %710 = vmatpush1.msra.mxu0 0.0
        %711 = vmatprep.subr.mxu0 0.0
        %712 = vmatpush1.msra.mxu0 0.0
        %713 = vmatprep.subr.mxu0 0.0
        %714 = vmatpush1.msra.mxu0 0.0
        %715 = vmatprep.subr.mxu0 0.0
        %716 = vmatpush1.msra.mxu0 0.0
        %717 = vmatprep.subr.mxu0 0.0
        %718 = vmatpush1.msra.mxu0 0.0
        %719 = vmatprep.subr.mxu0 0.0
        %720 = vmatpush1.msra.mxu0 0.0
        %721 = vmatprep.subr.mxu0 0.0
        %722 = vmatpush1.msra.mxu0 0.0
        %723 = vmatprep.subr.mxu0 0.0
        %724 = vmatpush1.msra.mxu0 0.0
        %725 = vmatprep.subr.mxu0 0.0
        %726 = vmatpush1.msra.mxu0 0.0
        %727 = vmatprep.subr.mxu0 0.0
        %728 = vmatpush1.msra.mxu0 0.0
        %729 = vmatprep.subr.mxu0 0.0
        %730 = vmatpush1.msra.mxu0 0.0
        %731 = vmatprep.subr.mxu0 0.0
        %732 = vmatpush1.msra.mxu0 0.0
        %733 = vmatprep.subr.mxu0 0.0
        %734 = vmatpush1.msra.mxu0 0.0
        %735 = vmatprep.subr.mxu0 0.0
        %736 = vmatpush1.msra.mxu0 0.0
        %737 = vmatprep.mubr.f32.mxu0 0.0
        %738 = vmatmul.mubr.f32.gmra.mrb[0].mxu0 %v595
        %v739 = vpop.f32.mrb[0].mxu0
        %v740 = vadd.f32 0.0, %v739
        %v741 = vpop.f32.mrb[0].mxu0
        %742 = vdwg.mxu0
        %v743 = vadd.f32 %v599, %v669
        %v744 = vxor.u32 %v743, 2147483648
        %v745 = vmul.f32 %v744, 1.442695
        %v746 = vpow.pop %v745
        %v747 = vadd.f32 %v746, 1.0
        %v748 = vrcp.pop %v747
        %v749 = vmul.f32 1.0, %v748
        %v750 = vadd.f32 %v600, %v671
        %v751 = vxor.u32 %v750, 2147483648
        %v752 = vmul.f32 %v751, 1.442695
        %v753 = vpow.pop %v752
        %v754 = vadd.f32 %v753, 1.0
        %v755 = vrcp.pop %v754
        %v756 = vmul.f32 1.0, %v755
        %v757 = vadd.f32 %v740, %v543
        %v758 = vmul.f32 %v749, %v757
        %v759 = vadd.f32 %v601, %v758
        %v760 = vtanh.pop %v759
        %v761 = vsub.f32 %v595, %v760
        %v762 = vmul.f32 %v756, %v761
        %v763 = vadd.f32 %v760, %v762
        %764 = vst [vmem:[%s327] sm:$0xff] %v763
        %s765 = scalar_lea.vmem %s288, 8 [#allocation4]
        %v766 = vld [vmem:[%s765] sm:$0xff]
        %v767 = vmul.f32 %v763, %v766
        %s768 = smul.u32 1, 3
        %s769 = smul.addr %s768, 8
        %s770 = scalar_lea.vmem [#allocation3], %s769
        %v771 = vld [vmem:[%s770] sm:$0xff]
        %v772 = vld [vmem:[%s770 + $0x8] sm:$0xff]
        %v773 = vld [vmem:[%s770 + $0x10] sm:$0xff]
        %774 = vmatprep.subr.mxu0 %v546
        %775 = vmatpush1.msra.mxu0 %v545
        %776 = vmatprep.subr.mxu0 %v549
        %777 = vmatpush1.msra.mxu0 %v548
        %778 = vmatprep.subr.mxu0 %v552
        %779 = vmatpush1.msra.mxu0 %v551
        %780 = vmatprep.subr.mxu0 %v555
        %781 = vmatpush1.msra.mxu0 %v554
        %782 = vmatprep.subr.mxu0 %v558
        %783 = vmatpush1.msra.mxu0 %v557
        %784 = vmatprep.subr.mxu0 %v561
        %785 = vmatpush1.msra.mxu0 %v560
        %786 = vmatprep.subr.mxu0 %v564
        %787 = vmatpush1.msra.mxu0 %v563
        %788 = vmatprep.subr.mxu0 %v567
        %789 = vmatpush1.msra.mxu0 %v566
        %790 = vmatprep.subr.mxu0 %v570
        %791 = vmatpush1.msra.mxu0 %v569
        %792 = vmatprep.subr.mxu0 %v573
        %793 = vmatpush1.msra.mxu0 %v572
        %794 = vmatprep.subr.mxu0 %v576
        %795 = vmatpush1.msra.mxu0 %v575
        %796 = vmatprep.subr.mxu0 %v579
        %797 = vmatpush1.msra.mxu0 %v578
        %798 = vmatprep.subr.mxu0 %v582
        %799 = vmatpush1.msra.mxu0 %v581
        %800 = vmatprep.subr.mxu0 %v585
        %801 = vmatpush1.msra.mxu0 %v584
        %802 = vmatprep.subr.mxu0 %v588
        %803 = vmatpush1.msra.mxu0 %v587
        %804 = vmatprep.subr.mxu0 %v591
        %805 = vmatpush1.msra.mxu0 %v590
        %806 = vmatprep.subr.mxu0 0.0
        %807 = vmatpush1.msra.mxu0 0.0
        %808 = vmatprep.subr.mxu0 0.0
        %809 = vmatpush1.msra.mxu0 0.0
        %810 = vmatprep.subr.mxu0 0.0
        %811 = vmatpush1.msra.mxu0 0.0
        %812 = vmatprep.subr.mxu0 0.0
        %813 = vmatpush1.msra.mxu0 0.0
        %814 = vmatprep.subr.mxu0 0.0
        %815 = vmatpush1.msra.mxu0 0.0
        %816 = vmatprep.subr.mxu0 0.0
        %817 = vmatpush1.msra.mxu0 0.0
        %818 = vmatprep.subr.mxu0 0.0
        %819 = vmatpush1.msra.mxu0 0.0
        %820 = vmatprep.subr.mxu0 0.0
        %821 = vmatpush1.msra.mxu0 0.0
        %822 = vmatprep.subr.mxu0 0.0
        %823 = vmatpush1.msra.mxu0 0.0
        %824 = vmatprep.subr.mxu0 0.0
        %825 = vmatpush1.msra.mxu0 0.0
        %826 = vmatprep.subr.mxu0 0.0
        %827 = vmatpush1.msra.mxu0 0.0
        %828 = vmatprep.subr.mxu0 0.0
        %829 = vmatpush1.msra.mxu0 0.0
        %830 = vmatprep.subr.mxu0 0.0
        %831 = vmatpush1.msra.mxu0 0.0
        %832 = vmatprep.subr.mxu0 0.0
        %833 = vmatpush1.msra.mxu0 0.0
        %834 = vmatprep.subr.mxu0 0.0
        %835 = vmatpush1.msra.mxu0 0.0
        %836 = vmatprep.subr.mxu0 0.0
        %837 = vmatpush1.msra.mxu0 0.0
        %838 = vmatprep.mubr.f32.mxu0 0.0
        %839 = vmatmul.mubr.f32.gmra.mrb[0].mxu0 %v767
        %v840 = vpop.f32.mrb[0].mxu0
        %v841 = vadd.f32 0.0, %v840
        %v842 = vpop.f32.mrb[0].mxu0
        %v843 = vadd.f32 0.0, %v842
        %844 = vdwg.mxu0
        %845 = vmatprep.subr.mxu0 0.0
        %846 = vmatpush1.msra.mxu0 %v547
        %847 = vmatprep.subr.mxu0 0.0
        %848 = vmatpush1.msra.mxu0 %v550
        %849 = vmatprep.subr.mxu0 0.0
        %850 = vmatpush1.msra.mxu0 %v553
        %851 = vmatprep.subr.mxu0 0.0
        %852 = vmatpush1.msra.mxu0 %v556
        %853 = vmatprep.subr.mxu0 0.0
        %854 = vmatpush1.msra.mxu0 %v559
        %855 = vmatprep.subr.mxu0 0.0
        %856 = vmatpush1.msra.mxu0 %v562
        %857 = vmatprep.subr.mxu0 0.0
        %858 = vmatpush1.msra.mxu0 %v565
        %859 = vmatprep.subr.mxu0 0.0
        %860 = vmatpush1.msra.mxu0 %v568
        %861 = vmatprep.subr.mxu0 0.0
        %862 = vmatpush1.msra.mxu0 %v571
        %863 = vmatprep.subr.mxu0 0.0
        %864 = vmatpush1.msra.mxu0 %v574
        %865 = vmatprep.subr.mxu0 0.0
        %866 = vmatpush1.msra.mxu0 %v577
        %867 = vmatprep.subr.mxu0 0.0
        %868 = vmatpush1.msra.mxu0 %v580
        %869 = vmatprep.subr.mxu0 0.0
        %870 = vmatpush1.msra.mxu0 %v583
        %871 = vmatprep.subr.mxu0 0.0
        %872 = vmatpush1.msra.mxu0 %v586
        %873 = vmatprep.subr.mxu0 0.0
        %874 = vmatpush1.msra.mxu0 %v589
        %875 = vmatprep.subr.mxu0 0.0
        %876 = vmatpush1.msra.mxu0 %v592
        %877 = vmatprep.subr.mxu0 0.0
        %878 = vmatpush1.msra.mxu0 0.0
        %879 = vmatprep.subr.mxu0 0.0
        %880 = vmatpush1.msra.mxu0 0.0
        %881 = vmatprep.subr.mxu0 0.0
        %882 = vmatpush1.msra.mxu0 0.0
        %883 = vmatprep.subr.mxu0 0.0
        %884 = vmatpush1.msra.mxu0 0.0
        %885 = vmatprep.subr.mxu0 0.0
        %886 = vmatpush1.msra.mxu0 0.0
        %887 = vmatprep.subr.mxu0 0.0
        %888 = vmatpush1.msra.mxu0 0.0
        %889 = vmatprep.subr.mxu0 0.0
        %890 = vmatpush1.msra.mxu0 0.0
        %891 = vmatprep.subr.mxu0 0.0
        %892 = vmatpush1.msra.mxu0 0.0
        %893 = vmatprep.subr.mxu0 0.0
        %894 = vmatpush1.msra.mxu0 0.0
        %895 = vmatprep.subr.mxu0 0.0
        %896 = vmatpush1.msra.mxu0 0.0
        %897 = vmatprep.subr.mxu0 0.0
        %898 = vmatpush1.msra.mxu0 0.0
        %899 = vmatprep.subr.mxu0 0.0
        %900 = vmatpush1.msra.mxu0 0.0
        %901 = vmatprep.subr.mxu0 0.0
        %902 = vmatpush1.msra.mxu0 0.0
        %903 = vmatprep.subr.mxu0 0.0
        %904 = vmatpush1.msra.mxu0 0.0
        %905 = vmatprep.subr.mxu0 0.0
        %906 = vmatpush1.msra.mxu0 0.0
        %907 = vmatprep.subr.mxu0 0.0
        %908 = vmatpush1.msra.mxu0 0.0
        %909 = vmatprep.mubr.f32.mxu0 0.0
        %910 = vmatmul.mubr.f32.gmra.mrb[0].mxu0 %v767
        %v911 = vpop.f32.mrb[0].mxu0
        %v912 = vadd.f32 0.0, %v911
        %v913 = vpop.f32.mrb[0].mxu0
        %914 = vdwg.mxu0
        %v915 = vadd.f32 %v771, %v841
        %v916 = vxor.u32 %v915, 2147483648
        %v917 = vmul.f32 %v916, 1.442695
        %v918 = vpow.pop %v917
        %v919 = vadd.f32 %v918, 1.0
        %v920 = vrcp.pop %v919
        %v921 = vmul.f32 1.0, %v920
        %v922 = vadd.f32 %v772, %v843
        %v923 = vxor.u32 %v922, 2147483648
        %v924 = vmul.f32 %v923, 1.442695
        %v925 = vpow.pop %v924
        %v926 = vadd.f32 %v925, 1.0
        %v927 = vrcp.pop %v926
        %v928 = vmul.f32 1.0, %v927
        %v929 = vadd.f32 %v912, %v543
        %v930 = vmul.f32 %v921, %v929
        %v931 = vadd.f32 %v773, %v930
        %v932 = vtanh.pop %v931
        %v933 = vsub.f32 %v767, %v932
        %v934 = vmul.f32 %v928, %v933
        %v935 = vadd.f32 %v932, %v934
        %s936 = scalar_lea.vmem %s327, 8 [#allocation9]
        %937 = vst [vmem:[%s936] sm:$0xff] %v935
        %938 = vst [vmem:[#allocation2] sm:$0xff] %v935
        %s939 = sand.u32 %s190, 1
        %s940 = scalar_lea.sflag [#allocation6], %s939
        %s941 = sand.u32 %s190, 1
        %s942 = smul.addr %s941, 16
        %s943 = scalar_lea.vmem [#allocation9], %s942
        // Predicated region
        $region61: #{tpu_custom_call.1} parent=47 // pred_check
          %p944 = pneg %p200
        $region62: #{tpu_custom_call.1} parent=47 // pred_check_branch
          %946 = sbr.rel (%p944) target = $region64
        $region63: #{tpu_custom_call.1} parent=47 // pred_region
          %s947 = smul.u32 2, %s25
          %s949 = ssub.s32 256, 256
          %950 = vsyncadd %s940, %s949
          %s951 = smul.addr %s947, 128
          %s952 = scalar_lea.hbm %s7, %s951
          %s953 = sshll.u32 %s943, 4
          %s954 = int_to_ptr.vmem [resolvable:$true] %s953
          %959 = dma.vmem_to_hbm [thread:$0]  %s954, 256, %s952, %s940, 128, 128, 8
        $region64: #{tpu_custom_call.1} parent=47 // pred_fallthru
          _
      $region48: #{tpu_custom_call.1} parent=5 // pred_fallthru
        _
      %p960 = scmp.le.s32.totalorder 2, %s20
      // Predicated region
      $region65: #{tpu_custom_call.1} parent=5 // pred_check
        %p961 = pneg %p960
      $region66: #{tpu_custom_call.1} parent=5 // pred_check_branch
        %963 = sbr.rel (%p961) target = $region68
      $region67: #{tpu_custom_call.1} parent=5 // pred_region
        %s964 = ssub.s32 %s20, 2
        // Predicated region
        $region69: #{tpu_custom_call.1} parent=67 // pred_check
          %p965 = pneg %p206
        $region70: #{tpu_custom_call.1} parent=67 // pred_check_branch
          %967 = sbr.rel (%p965) target = $region72
        $region71: #{tpu_custom_call.1} parent=67 // pred_region
          %s968 = sand.u32 %s191, 1
          %s969 = scalar_lea.sflag [#allocation6], %s968
          %s970 = sand.u32 %s191, 1
          %s971 = smul.addr %s970, 16
          %s972 = scalar_lea.vmem [#allocation9], %s971
          %973 = dma.done %s969, 256
        $region72: #{tpu_custom_call.1} parent=67 // pred_fallthru
          _
      $region68: #{tpu_custom_call.1} parent=5 // pred_fallthru
        _
    $region6: #{tpu_custom_call.1} parent=1 // loop_footer
      %s24 = sadd.s32 1, %s20
    $region7: #{tpu_custom_call.1} parent=1 // loop_footer_branch
      %19 = sbr.rel target = $region3
    $region8: #{tpu_custom_call.1} parent=1 // loop_exit
      _
    %974 = vsyncpa [#allocation5], 1
    %s975 = scalar_lea.sflag [#allocation5], 1
    %976 = vsyncpa %s975, 1
    %977 = vsyncpa [#allocation8], 1
    %978 = vsyncpa [#allocation6], 1
    %s979 = scalar_lea.sflag [#allocation6], 1
    %980 = vsyncpa %s979, 1

</llo_original>
